<compile_context>
chip_gen: v5e
topology: v5e:2x2
jax: 0.10.0
libtpu: 0.0.40
codegen_flags: <defaults>
</compile_context>

<pallas_src>
import jax
import jax.numpy as jnp
from jax.experimental import pallas as pl
from jax.experimental.pallas import tpu as pltpu


def _round_up(x, m):
    return ((x + m - 1) // m) * m


# ---------------------------------------------------------------------------
# Pass A: tiled GAP (sum over spatial lanes, accumulated across HW tiles).
# ---------------------------------------------------------------------------
def _gap_kernel(x_ref, gap_ref):
    """x_ref: (K, bc_tile, hw_tile) input dtype; gap_ref: (K, bc_tile) f32 acc."""
    @pl.when(pl.program_id(1) == 0)
    def _():
        gap_ref[...] = jnp.zeros_like(gap_ref)

    # Padded lanes are zero, so the partial sums stay exact; divide by the true
    # H*W outside the kernel.
    gap_ref[...] += jnp.sum(x_ref[...].astype(jnp.float32), axis=-1)


# ---------------------------------------------------------------------------
# Pass B: weighted sum over branches (attention broadcast over spatial lanes).
# ---------------------------------------------------------------------------
def _apply_kernel(x_ref, attn_ref, out_ref):
    """x_ref: (K, bc_tile, hw_tile); attn_ref: (K, bc_tile, 1) f32;
    out_ref: (bc_tile, hw_tile) in the input dtype."""
    k_total = x_ref.shape[0]
    terms = [x_ref[k].astype(jnp.float32) * attn_ref[k] for k in range(k_total)]
    # Pairwise (tree) accumulation: shorter VALU dependency chain than a
    # K-deep serial sum.
    while len(terms) > 1:
        nxt = [terms[i] + terms[i + 1] for i in range(0, len(terms) - 1, 2)]
        if len(terms) % 2:
            nxt.append(terms[-1])
        terms = nxt
    out_ref[...] = terms[0].astype(out_ref.dtype)


# ---------------------------------------------------------------------------
# Wrapper
# ---------------------------------------------------------------------------
@jax.jit
def agl_forward(xs, w_fc, bn_gamma, bn_beta, bn_mean, bn_var, w_fcs, b_fcs,
                eps=1e-5):
    """xs: (K, B, C, H, W); w_fc: (L, C, K) (torch (L, C, K, 1) squeezed);
    w_fcs: (K, C, L) (torch (C, L, 1, 1) per branch); b_fcs: (K, C)."""
    K, B, C, H, W = xs.shape
    HW = H * W
    BC = B * C
    x_dtype = xs.dtype
    itemsize = jnp.dtype(x_dtype).itemsize

    # ---- tile selection (lane-dense, VMEM-aware) ----------------------------
    sub = {4: 8, 2: 16, 1: 32}.get(itemsize, 8)     # sublane multiple per dtype
    BCp0 = _round_up(BC, sub)
    if BCp0 <= 256:
        bc_tile = BCp0
        BCp = BCp0
    else:
        bc_tile = 256                                # multiple of 128 and of sub
        BCp = _round_up(BC, bc_tile)

    HWp = _round_up(HW, 128)
    budget = 24 * 1024 * 1024                        # double-buffered block budget
    max_hw = budget // (2 * (K + 1) * bc_tile * itemsize)
    cap = max(128, min(512, (max_hw // 128) * 128, HWp))
    hw_tile = 128
    for cand in range(cap, 0, -128):                 # largest 128-multiple divisor
        if HWp % cand == 0:
            hw_tile = cand
            break

    nbc = BCp // bc_tile
    nhw = HWp // hw_tile

    # ---- layout: (K, B*C, HWp), zero-padded ---------------------------------
    x = xs.reshape(K, BC, HW)
    if BCp != BC or HWp != HW:
        x = jnp.pad(x, ((0, 0), (0, BCp - BC), (0, HWp - HW)))

    def _limit(need):
        return int(min(32 * 1024 * 1024, max(8 * 1024 * 1024, need + 4 * 1024 * 1024)))

    gap_need = 2 * (K * bc_tile * hw_tile * itemsize + K * bc_tile * 4)
    apply_need = 2 * (K * bc_tile * hw_tile * itemsize
                      + K * bc_tile * 4
                      + bc_tile * hw_tile * itemsize)

    # ---- pass A: GAP reduction ----------------------------------------------
    gap_sum = pl.pallas_call(
        _gap_kernel,
        out_shape=jax.ShapeDtypeStruct((K, BCp), jnp.float32),
        grid=(nbc, nhw),
        in_specs=[pl.BlockSpec((K, bc_tile, hw_tile), lambda i, j: (0, i, j))],
        out_specs=pl.BlockSpec((K, bc_tile), lambda i, j: (0, i)),
        compiler_params=pltpu.CompilerParams(
            dimension_semantics=("parallel", "arbitrary"),
            vmem_limit_bytes=_limit(gap_need)),
    )(x)

    # ---- gating math (microscopic; plain XLA, all f32) ----------------------
    gap = gap_sum[:, :BC].reshape(K, B, C) * (1.0 / float(HW))      # true H*W divisor
    z = jnp.einsum('kbc,lck->bl', gap, w_fc.astype(jnp.float32))    # fused fc conv
    inv_std = jax.lax.rsqrt(bn_var.astype(jnp.float32) + eps)
    z = (z - bn_mean) * inv_std * bn_gamma + bn_beta                # BN (eval)
    z = jnp.maximum(z, 0.0)                                         # ReLU
    logits = (jnp.einsum('bl,kcl->kbc', z, w_fcs.astype(jnp.float32))
              + b_fcs.astype(jnp.float32)[:, None, :])              # per-branch 1x1
    attn = jax.nn.softmax(logits, axis=0)                           # (K, B, C)
    attn_flat = attn.reshape(K, BC)
    if BCp != BC:
        attn_flat = jnp.pad(attn_flat, ((0, 0), (0, BCp - BC)))
    attn_pad = attn_flat[:, :, None]                                # (K, BCp, 1)

    # ---- pass B: weighted sum over branches ---------------------------------
    out_pad = pl.pallas_call(
        _apply_kernel,
        out_shape=jax.ShapeDtypeStruct((BCp, HWp), x_dtype),
        grid=(nbc, nhw),
        in_specs=[pl.BlockSpec((K, bc_tile, hw_tile), lambda i, j: (0, i, j)),
                  pl.BlockSpec((K, bc_tile, 1), lambda i, j: (0, i, 0))],
        out_specs=pl.BlockSpec((bc_tile, hw_tile), lambda i, j: (i, j)),
        compiler_params=pltpu.CompilerParams(
            dimension_semantics=("parallel", "parallel"),
            vmem_limit_bytes=_limit(apply_need)),
    )(x, attn_pad)

    return out_pad[:BC, :HW].reshape(B, C, H, W)


def agl_reference(xs, w_fc, bn_gamma, bn_beta, bn_mean, bn_var, w_fcs, b_fcs,
                  eps=1e-5):
    """Pure-JAX reference matching the PyTorch forward (BN in eval mode)."""
    gap = jnp.mean(xs, axis=(3, 4))                          # (K, B, C)
    z = jnp.einsum('kbc,lck->bl', gap, w_fc)                 # fc conv (K,1) kernel
    z = (z - bn_mean) / jnp.sqrt(bn_var + eps) * bn_gamma + bn_beta
    z = jnp.maximum(z, 0.0)
    logits = jnp.einsum('bl,kcl->kbc', z, w_fcs) + b_fcs[:, None, :]
    attn = jax.nn.softmax(logits, axis=0)                    # softmax over branches
    return jnp.sum(xs * attn[:, :, :, None, None], axis=0)   # (B, C, H, W)


if __name__ == "__main__":
    B, C, H, W = 2, 4, 16, 16
    K = 9                      # branches
    reduce = 16
    L = max(C // reduce, 32)   # len = max(channels // reduce, 32) = 32

    key = jax.random.PRNGKey(0)
    keys = jax.random.split(key, 8)
    xs = jax.random.normal(keys[0], (K, B, C, H, W), dtype=jnp.float32)
    w_fc = 0.1 * jax.random.normal(keys[1], (L, C, K), dtype=jnp.float32)
    bn_gamma = 1.0 + 0.1 * jax.random.normal(keys[2], (L,), dtype=jnp.float32)
    bn_beta = 0.1 * jax.random.normal(keys[3], (L,), dtype=jnp.float32)
    bn_mean = 0.05 * jax.random.normal(keys[4], (L,), dtype=jnp.float32)
    bn_var = jnp.abs(1.0 + 0.1 * jax.random.normal(keys[5], (L,), dtype=jnp.float32))
    w_fcs = 0.1 * jax.random.normal(keys[6], (K, C, L), dtype=jnp.float32)
    b_fcs = 0.1 * jax.random.normal(keys[7], (K, C), dtype=jnp.float32)

    out = agl_forward(xs, w_fc, bn_gamma, bn_beta, bn_mean, bn_var, w_fcs, b_fcs)
    out = jax.block_until_ready(out)

    ref = agl_reference(xs, w_fc, bn_gamma, bn_beta, bn_mean, bn_var, w_fcs, b_fcs)
    assert out.shape == (B, C, H, W)
    err = float(jnp.max(jnp.abs(out - ref)))
    assert jnp.allclose(out, ref, atol=1e-4, rtol=1e-4), f"max abs err {err}"
    print("KERNEL_OK")
</pallas_src>

<mosaic_0001>
module attributes {stable_mosaic.version = 11 : i64} {
  func.func @_gap_kernel(%arg0: i32, %arg1: i32, %arg2: memref<9x8x256xf32, #tpu.memory_space<vmem>>, %arg3: memref<9x8xf32, #tpu.memory_space<vmem>>) attributes {dimension_semantics = [#tpu.dimension_semantics<parallel>, #tpu.dimension_semantics<arbitrary>], iteration_bounds = array<i64: 1, 1>, scalar_prefetch = 0 : i64, scratch_operands = 0 : i64, tpu.core_type = #tpu.core_type<tc>, window_params = [{transform_indices = @transform_0, window_bounds = array<i64: 9, 8, 256>}, {transform_indices = @transform_1, window_bounds = array<i64: 9, 8>}]} {
    %c0_i32 = arith.constant 0 : i32
    %0 = arith.cmpi eq, %arg1, %c0_i32 : i32
    %1 = arith.extui %0 : i1 to i32
    %c0_i32_0 = arith.constant 0 : i32
    %2 = arith.cmpi ne, %1, %c0_i32_0 : i32
    scf.if %2 {
      %cst_7 = arith.constant 0.000000e+00 : f32
      %8 = vector.broadcast %cst_7 : f32 to vector<9x8xf32>
      %c0_8 = arith.constant 0 : index
      %c0_9 = arith.constant 0 : index
      %9 = vector.load %arg3[%c0_8, %c0_9] : memref<9x8xf32, #tpu.memory_space<vmem>>, vector<9x8xf32>
      tpu.vector_store %arg3[%c0_8, %c0_9], %8 {strides = array<i32>} : memref<9x8xf32, #tpu.memory_space<vmem>>, vector<9x8xf32>,
    } else {
    }
    %c0 = arith.constant 0 : index
    %c0_1 = arith.constant 0 : index
    %3 = vector.load %arg3[%c0, %c0_1] : memref<9x8xf32, #tpu.memory_space<vmem>>, vector<9x8xf32>
    %c0_2 = arith.constant 0 : index
    %c0_3 = arith.constant 0 : index
    %c0_4 = arith.constant 0 : index
    %4 = vector.load %arg2[%c0_2, %c0_3, %c0_4] : memref<9x8x256xf32, #tpu.memory_space<vmem>>, vector<9x8x256xf32>
    %cst = arith.constant dense<0.000000e+00> : vector<9x8xf32>
    %5 = vector.multi_reduction <add>, %4, %cst [2] : vector<9x8x256xf32> to vector<9x8xf32>
    %6 = arith.addf %3, %5 : vector<9x8xf32>
    %c0_5 = arith.constant 0 : index
    %c0_6 = arith.constant 0 : index
    %7 = vector.load %arg3[%c0_5, %c0_6] : memref<9x8xf32, #tpu.memory_space<vmem>>, vector<9x8xf32>
    tpu.vector_store %arg3[%c0_5, %c0_6], %6 {strides = array<i32>} : memref<9x8xf32, #tpu.memory_space<vmem>>, vector<9x8xf32>,
    return
  }
  func.func @transform_0(%arg0: i32, %arg1: i32) -> (i32, i32, i32) {
    %c0_i32 = arith.constant 0 : i32
    %c0_i32_0 = arith.constant 0 : i32
    return %c0_i32, %arg0, %arg1 : i32, i32, i32
  }
  func.func @transform_1(%arg0: i32, %arg1: i32) -> (i32, i32) {
    %c0_i32 = arith.constant 0 : i32
    %c0_i32_0 = arith.constant 0 : i32
    return %c0_i32, %arg0 : i32, i32
  }
}

module attributes {stable_mosaic.version = 11 : i64} {
  func.func @_apply_kernel(%arg0: i32, %arg1: i32, %arg2: memref<9x8x256xf32, #tpu.memory_space<vmem>>, %arg3: memref<9x8x1xf32, #tpu.memory_space<vmem>>, %arg4: memref<8x256xf32, #tpu.memory_space<vmem>>) attributes {dimension_semantics = [#tpu.dimension_semantics<parallel>, #tpu.dimension_semantics<parallel>], iteration_bounds = array<i64: 1, 1>, scalar_prefetch = 0 : i64, scratch_operands = 0 : i64, tpu.core_type = #tpu.core_type<tc>, window_params = [{transform_indices = @transform_0, window_bounds = array<i64: 9, 8, 256>}, {transform_indices = @transform_1, window_bounds = array<i64: 9, 8, 1>}, {transform_indices = @transform_2, window_bounds = array<i64: 8, 256>}]} {
    %c0 = arith.constant 0 : index
    %c0_0 = arith.constant 0 : index
    %c0_1 = arith.constant 0 : index
    %0 = vector.load %arg2[%c0, %c0_0, %c0_1] : memref<9x8x256xf32, #tpu.memory_space<vmem>>, vector<1x8x256xf32>
    %1 = vector.shape_cast %0 : vector<1x8x256xf32> to vector<8x256xf32>
    %c0_2 = arith.constant 0 : index
    %c0_3 = arith.constant 0 : index
    %c0_4 = arith.constant 0 : index
    %2 = vector.load %arg3[%c0_2, %c0_3, %c0_4] : memref<9x8x1xf32, #tpu.memory_space<vmem>>, vector<1x8x1xf32>
    %3 = vector.shape_cast %2 : vector<1x8x1xf32> to vector<8x1xf32>
    %4 = vector.broadcast %3 : vector<8x1xf32> to vector<8x256xf32>
    %5 = arith.mulf %1, %4 : vector<8x256xf32>
    %c1 = arith.constant 1 : index
    %c0_5 = arith.constant 0 : index
    %c0_6 = arith.constant 0 : index
    %6 = vector.load %arg2[%c1, %c0_5, %c0_6] : memref<9x8x256xf32, #tpu.memory_space<vmem>>, vector<1x8x256xf32>
    %7 = vector.shape_cast %6 : vector<1x8x256xf32> to vector<8x256xf32>
    %c1_7 = arith.constant 1 : index
    %c0_8 = arith.constant 0 : index
    %c0_9 = arith.constant 0 : index
    %8 = vector.load %arg3[%c1_7, %c0_8, %c0_9] : memref<9x8x1xf32, #tpu.memory_space<vmem>>, vector<1x8x1xf32>
    %9 = vector.shape_cast %8 : vector<1x8x1xf32> to vector<8x1xf32>
    %10 = vector.broadcast %9 : vector<8x1xf32> to vector<8x256xf32>
    %11 = arith.mulf %7, %10 : vector<8x256xf32>
    %c2 = arith.constant 2 : index
    %c0_10 = arith.constant 0 : index
    %c0_11 = arith.constant 0 : index
    %12 = vector.load %arg2[%c2, %c0_10, %c0_11] : memref<9x8x256xf32, #tpu.memory_space<vmem>>, vector<1x8x256xf32>
    %13 = vector.shape_cast %12 : vector<1x8x256xf32> to vector<8x256xf32>
    %c2_12 = arith.constant 2 : index
    %c0_13 = arith.constant 0 : index
    %c0_14 = arith.constant 0 : index
    %14 = vector.load %arg3[%c2_12, %c0_13, %c0_14] : memref<9x8x1xf32, #tpu.memory_space<vmem>>, vector<1x8x1xf32>
    %15 = vector.shape_cast %14 : vector<1x8x1xf32> to vector<8x1xf32>
    %16 = vector.broadcast %15 : vector<8x1xf32> to vector<8x256xf32>
    %17 = arith.mulf %13, %16 : vector<8x256xf32>
    %c3 = arith.constant 3 : index
    %c0_15 = arith.constant 0 : index
    %c0_16 = arith.constant 0 : index
    %18 = vector.load %arg2[%c3, %c0_15, %c0_16] : memref<9x8x256xf32, #tpu.memory_space<vmem>>, vector<1x8x256xf32>
    %19 = vector.shape_cast %18 : vector<1x8x256xf32> to vector<8x256xf32>
    %c3_17 = arith.constant 3 : index
    %c0_18 = arith.constant 0 : index
    %c0_19 = arith.constant 0 : index
    %20 = vector.load %arg3[%c3_17, %c0_18, %c0_19] : memref<9x8x1xf32, #tpu.memory_space<vmem>>, vector<1x8x1xf32>
    %21 = vector.shape_cast %20 : vector<1x8x1xf32> to vector<8x1xf32>
    %22 = vector.broadcast %21 : vector<8x1xf32> to vector<8x256xf32>
    %23 = arith.mulf %19, %22 : vector<8x256xf32>
    %c4 = arith.constant 4 : index
    %c0_20 = arith.constant 0 : index
    %c0_21 = arith.constant 0 : index
    %24 = vector.load %arg2[%c4, %c0_20, %c0_21] : memref<9x8x256xf32, #tpu.memory_space<vmem>>, vector<1x8x256xf32>
    %25 = vector.shape_cast %24 : vector<1x8x256xf32> to vector<8x256xf32>
    %c4_22 = arith.constant 4 : index
    %c0_23 = arith.constant 0 : index
    %c0_24 = arith.constant 0 : index
    %26 = vector.load %arg3[%c4_22, %c0_23, %c0_24] : memref<9x8x1xf32, #tpu.memory_space<vmem>>, vector<1x8x1xf32>
    %27 = vector.shape_cast %26 : vector<1x8x1xf32> to vector<8x1xf32>
    %28 = vector.broadcast %27 : vector<8x1xf32> to vector<8x256xf32>
    %29 = arith.mulf %25, %28 : vector<8x256xf32>
    %c5 = arith.constant 5 : index
    %c0_25 = arith.constant 0 : index
    %c0_26 = arith.constant 0 : index
    %30 = vector.load %arg2[%c5, %c0_25, %c0_26] : memref<9x8x256xf32, #tpu.memory_space<vmem>>, vector<1x8x256xf32>
    %31 = vector.shape_cast %30 : vector<1x8x256xf32> to vector<8x256xf32>
    %c5_27 = arith.constant 5 : index
    %c0_28 = arith.constant 0 : index
    %c0_29 = arith.constant 0 : index
    %32 = vector.load %arg3[%c5_27, %c0_28, %c0_29] : memref<9x8x1xf32, #tpu.memory_space<vmem>>, vector<1x8x1xf32>
    %33 = vector.shape_cast %32 : vector<1x8x1xf32> to vector<8x1xf32>
    %34 = vector.broadcast %33 : vector<8x1xf32> to vector<8x256xf32>
    %35 = arith.mulf %31, %34 : vector<8x256xf32>
    %c6 = arith.constant 6 : index
    %c0_30 = arith.constant 0 : index
    %c0_31 = arith.constant 0 : index
    %36 = vector.load %arg2[%c6, %c0_30, %c0_31] : memref<9x8x256xf32, #tpu.memory_space<vmem>>, vector<1x8x256xf32>
    %37 = vector.shape_cast %36 : vector<1x8x256xf32> to vector<8x256xf32>
    %c6_32 = arith.constant 6 : index
    %c0_33 = arith.constant 0 : index
    %c0_34 = arith.constant 0 : index
    %38 = vector.load %arg3[%c6_32, %c0_33, %c0_34] : memref<9x8x1xf32, #tpu.memory_space<vmem>>, vector<1x8x1xf32>
    %39 = vector.shape_cast %38 : vector<1x8x1xf32> to vector<8x1xf32>
    %40 = vector.broadcast %39 : vector<8x1xf32> to vector<8x256xf32>
    %41 = arith.mulf %37, %40 : vector<8x256xf32>
    %c7 = arith.constant 7 : index
    %c0_35 = arith.constant 0 : index
    %c0_36 = arith.constant 0 : index
    %42 = vector.load %arg2[%c7, %c0_35, %c0_36] : memref<9x8x256xf32, #tpu.memory_space<vmem>>, vector<1x8x256xf32>
    %43 = vector.shape_cast %42 : vector<1x8x256xf32> to vector<8x256xf32>
    %c7_37 = arith.constant 7 : index
    %c0_38 = arith.constant 0 : index
    %c0_39 = arith.constant 0 : index
    %44 = vector.load %arg3[%c7_37, %c0_38, %c0_39] : memref<9x8x1xf32, #tpu.memory_space<vmem>>, vector<1x8x1xf32>
    %45 = vector.shape_cast %44 : vector<1x8x1xf32> to vector<8x1xf32>
    %46 = vector.broadcast %45 : vector<8x1xf32> to vector<8x256xf32>
    %47 = arith.mulf %43, %46 : vector<8x256xf32>
    %c8 = arith.constant 8 : index
    %c0_40 = arith.constant 0 : index
    %c0_41 = arith.constant 0 : index
    %48 = vector.load %arg2[%c8, %c0_40, %c0_41] : memref<9x8x256xf32, #tpu.memory_space<vmem>>, vector<1x8x256xf32>
    %49 = vector.shape_cast %48 : vector<1x8x256xf32> to vector<8x256xf32>
    %c8_42 = arith.constant 8 : index
    %c0_43 = arith.constant 0 : index
    %c0_44 = arith.constant 0 : index
    %50 = vector.load %arg3[%c8_42, %c0_43, %c0_44] : memref<9x8x1xf32, #tpu.memory_space<vmem>>, vector<1x8x1xf32>
    %51 = vector.shape_cast %50 : vector<1x8x1xf32> to vector<8x1xf32>
    %52 = vector.broadcast %51 : vector<8x1xf32> to vector<8x256xf32>
    %53 = arith.mulf %49, %52 : vector<8x256xf32>
    %54 = arith.addf %5, %11 : vector<8x256xf32>
    %55 = arith.addf %17, %23 : vector<8x256xf32>
    %56 = arith.addf %29, %35 : vector<8x256xf32>
    %57 = arith.addf %41, %47 : vector<8x256xf32>
    %58 = arith.addf %54, %55 : vector<8x256xf32>
    %59 = arith.addf %56, %57 : vector<8x256xf32>
    %60 = arith.addf %58, %59 : vector<8x256xf32>
    %61 = arith.addf %60, %53 : vector<8x256xf32>
    %c0_45 = arith.constant 0 : index
    %c0_46 = arith.constant 0 : index
    %62 = vector.load %arg4[%c0_45, %c0_46] : memref<8x256xf32, #tpu.memory_space<vmem>>, vector<8x256xf32>
    tpu.vector_store %arg4[%c0_45, %c0_46], %61 {strides = array<i32>} : memref<8x256xf32, #tpu.memory_space<vmem>>, vector<8x256xf32>,
    return
  }
  func.func @transform_0(%arg0: i32, %arg1: i32) -> (i32, i32, i32) {
    %c0_i32 = arith.constant 0 : i32
    %c0_i32_0 = arith.constant 0 : i32
    return %c0_i32, %arg0, %arg1 : i32, i32, i32
  }
  func.func @transform_1(%arg0: i32, %arg1: i32) -> (i32, i32, i32) {
    %c0_i32 = arith.constant 0 : i32
    %c0_i32_0 = arith.constant 0 : i32
    %c0_i32_1 = arith.constant 0 : i32
    return %c0_i32, %arg0, %c0_i32_0 : i32, i32, i32
  }
  func.func @transform_2(%arg0: i32, %arg1: i32) -> (i32, i32) {
    %c0_i32 = arith.constant 0 : i32
    return %arg0, %arg1 : i32, i32
  }
}

</mosaic_0001>

<llo_original>
// kernel: agl_forward.2
$region0: #{agl_forward.2}
  #allocation0 [shape = 'u32[]', space=smem, size = 0x4, offset = 0x4, fixed_abs, tag = 'smem constant byte address 0x4 - core index']
  #allocation1 [shape = 'u32[72,128]{1,0:T(1,128)}', space=vmem, size = 0x9000, scoped, tag = 'internal scratch']
  %s0 = inlined_call_operand.vmem [shape: f32[9,8,256], index: 0, kind: input, shape index: {}]
  %s1 = inlined_call_operand.vmem [shape: f32[9,8], index: 1, kind: output, shape index: {}]
  %s2 = sld [smem:[#allocation0]]
  $region18: #{agl_forward.2} parent=0
    _
  %s4 = ssub.s32 1, %s2
  %s5 = scalar_select 0, %s4, %s2
  // Predicated region
  $region2: #{agl_forward.2} parent=0 // pred_check
    _
  $region3: #{agl_forward.2} parent=0 // pred_check_branch
    %7 = sbr.rel (0) target = $region5
  $region4: #{agl_forward.2} parent=0 // pred_region
    _
  $region5: #{agl_forward.2} parent=0 // pred_fallthru
    _
  %p8 = scmp.eq.s32.totalorder 0, 0
  // Predicated region
  $region6: #{agl_forward.2} parent=0 // pred_check
    %p9 = pneg %p8
  $region7: #{agl_forward.2} parent=0 // pred_check_branch
    %11 = sbr.rel (%p9) target = $region9
  $region8: #{agl_forward.2} parent=0 // pred_region
    %vm12 = vcmask 64512
    %13 = vst.msk [vmem:[%s1] sm:$0xff] %vm12, 0.0
    %vm14 = vcmask 57344
    %15 = vst.msk [vmem:[%s1 + $0x8] sm:$0x1] %vm14, 0.0
  $region9: #{agl_forward.2} parent=0 // pred_fallthru
    _
  %v16 = vld [vmem:[%s1] sm:$0xff]
  %v17 = vld [vmem:[%s1 + $0x8] sm:$0x1]
  %v18 = vld [vmem:[%s0] sm:$0xff]
  %v19 = vld [vmem:[%s0 + $0x8] sm:$0xff]
  %v20 = vld [vmem:[%s0 + $0x10] sm:$0xff]
  %v21 = vld [vmem:[%s0 + $0x18] sm:$0xff]
  %v22 = vld [vmem:[%s0 + $0x20] sm:$0xff]
  %v23 = vld [vmem:[%s0 + $0x28] sm:$0xff]
  %v24 = vld [vmem:[%s0 + $0x30] sm:$0xff]
  %v25 = vld [vmem:[%s0 + $0x38] sm:$0xff]
  %v26 = vld [vmem:[%s0 + $0x40] sm:$0xff]
  %v27 = vld [vmem:[%s0 + $0x48] sm:$0xff]
  %v28 = vld [vmem:[%s0 + $0x50] sm:$0xff]
  %v29 = vld [vmem:[%s0 + $0x58] sm:$0xff]
  %v30 = vld [vmem:[%s0 + $0x60] sm:$0xff]
  %v31 = vld [vmem:[%s0 + $0x68] sm:$0xff]
  %v32 = vld [vmem:[%s0 + $0x70] sm:$0xff]
  %v33 = vld [vmem:[%s0 + $0x78] sm:$0xff]
  %v34 = vld [vmem:[%s0 + $0x80] sm:$0xff]
  %v35 = vld [vmem:[%s0 + $0x88] sm:$0xff]
  %v36 = vadd.f32 %v18, %v19
  %37 = vadd.xlane.f32.xlu0 %v36
  %v38 = vpop.xlane.xlu0 %37
  %v39 = vadd.f32 %v20, %v21
  %40 = vadd.xlane.f32.xlu0 %v39
  %v41 = vpop.xlane.xlu0 %40
  %v42 = vadd.f32 %v22, %v23
  %43 = vadd.xlane.f32.xlu0 %v42
  %v44 = vpop.xlane.xlu0 %43
  %v45 = vadd.f32 %v24, %v25
  %46 = vadd.xlane.f32.xlu0 %v45
  %v47 = vpop.xlane.xlu0 %46
  %v48 = vadd.f32 %v26, %v27
  %49 = vadd.xlane.f32.xlu0 %v48
  %v50 = vpop.xlane.xlu0 %49
  %v51 = vadd.f32 %v28, %v29
  %52 = vadd.xlane.f32.xlu0 %v51
  %v53 = vpop.xlane.xlu0 %52
  %v54 = vadd.f32 %v30, %v31
  %55 = vadd.xlane.f32.xlu0 %v54
  %v56 = vpop.xlane.xlu0 %55
  %v57 = vadd.f32 %v32, %v33
  %58 = vadd.xlane.f32.xlu0 %v57
  %v59 = vpop.xlane.xlu0 %58
  %v60 = vadd.f32 %v34, %v35
  %61 = vadd.xlane.f32.xlu0 %v60
  %v62 = vpop.xlane.xlu0 %61
  %v72 = vlaneseq
  %v73 = vand.u32 %v72, 127
  %v74 = vperm.slane %v38, %v73
  %v75 = vperm.slane %v41, %v73
  %v76 = vperm.slane %v44, %v73
  %v77 = vperm.slane %v47, %v73
  %v78 = vperm.slane %v50, %v73
  %v79 = vperm.slane %v53, %v73
  %v80 = vperm.slane %v56, %v73
  %v81 = vperm.slane %v59, %v73
  %v82 = vperm.slane %v62, %v73
  %vm83 = vcmask 1041409
  %v84 = vsel %vm83, %v75, %v74
  %vm85 = vcmask 1042434
  %v86 = vsel %vm85, %v76, %v84
  %vm87 = vcmask 1043459
  %v88 = vsel %vm87, %v77, %v86
  %vm89 = vcmask 1044484
  %v90 = vsel %vm89, %v78, %v88
  %vm91 = vcmask 1045509
  %v92 = vsel %vm91, %v79, %v90
  %vm93 = vcmask 1046534
  %v94 = vsel %vm93, %v80, %v92
  %vm95 = vcmask 1047559
  %v96 = vsel %vm95, %v81, %v94
  %v99 = vadd.f32 %v16, %v96
  %v100 = vadd.f32 %v17, %v82
  %vm101 = vcmask 64512
  %102 = vst.msk [vmem:[%s1] sm:$0xff] %vm101, %v99
  %vm103 = vcmask 57344
  %104 = vst.msk [vmem:[%s1 + $0x8] sm:$0x1] %vm103, %v100
  // Predicated region
  $region10: #{agl_forward.2} parent=0 // pred_check
    _
  $region11: #{agl_forward.2} parent=0 // pred_check_branch
    %106 = sbr.rel (0) target = $region13
  $region12: #{agl_forward.2} parent=0 // pred_region
    _
  $region13: #{agl_forward.2} parent=0 // pred_fallthru
    _
  // Predicated region
  $region14: #{agl_forward.2} parent=0 // pred_check
    _
  $region15: #{agl_forward.2} parent=0 // pred_check_branch
    %108 = sbr.rel (0) target = $region17
  $region16: #{agl_forward.2} parent=0 // pred_region
    _
  $region17: #{agl_forward.2} parent=0 // pred_fallthru
    _

// kernel: agl_forward.3
$region0: #{agl_forward.3}
  #allocation0 [shape = 'u32[]', space=smem, size = 0x4, offset = 0x4, fixed_abs, tag = 'smem constant byte address 0x4 - core index']
  #allocation1 [shape = 'u32[72,128]{1,0:T(1,128)}', space=vmem, size = 0x9000, scoped, tag = 'internal scratch']
  %s0 = inlined_call_operand.vmem [shape: f32[9,8,256], index: 0, kind: input, shape index: {}]
  %s1 = inlined_call_operand.vmem [shape: f32[9,8,1], index: 1, kind: input, shape index: {}]
  %s2 = inlined_call_operand.vmem [shape: f32[8,256], index: 2, kind: output, shape index: {}]
  %s3 = sld [smem:[#allocation0]]
  $region18: #{agl_forward.3} parent=0
    _
  %s5 = ssub.s32 1, %s3
  %s6 = scalar_select 0, %s5, %s3
  // Predicated region
  $region2: #{agl_forward.3} parent=0 // pred_check
    _
  $region3: #{agl_forward.3} parent=0 // pred_check_branch
    %8 = sbr.rel (0) target = $region5
  $region4: #{agl_forward.3} parent=0 // pred_region
    _
  $region5: #{agl_forward.3} parent=0 // pred_fallthru
    _
  // Predicated region
  $region6: #{agl_forward.3} parent=0 // pred_check
    _
  $region7: #{agl_forward.3} parent=0 // pred_check_branch
    %10 = sbr.rel (0) target = $region9
  $region8: #{agl_forward.3} parent=0 // pred_region
    _
  $region9: #{agl_forward.3} parent=0 // pred_fallthru
    _
  %v11 = vld [vmem:[%s0] sm:$0xff]
  %v12 = vld [vmem:[%s0 + $0x8] sm:$0xff]
  %v13 = vld [vmem:[%s1] sm:$0xff]
  %15 = vset.pattern.permute.xlu0 0
  %16 = vperm.xlu0 %15, %v13
  %v17 = vpop.permute.xlu0 %16
  %v19 = vmul.f32 %v11, %v17
  %v20 = vmul.f32 %v12, %v17
  %s21 = scalar_lea.vmem %s0, 16
  %v22 = vld [vmem:[%s21] sm:$0xff]
  %v23 = vld [vmem:[%s21 + $0x8] sm:$0xff]
  %s24 = scalar_lea.vmem %s1, 8
  %v25 = vld [vmem:[%s24] sm:$0xff]
  %27 = vset.pattern.permute.xlu0 0
  %28 = vperm.xlu0 %27, %v25
  %v29 = vpop.permute.xlu0 %28
  %v31 = vmul.f32 %v22, %v29
  %v32 = vmul.f32 %v23, %v29
  %s33 = scalar_lea.vmem %s0, 32
  %v34 = vld [vmem:[%s33] sm:$0xff]
  %v35 = vld [vmem:[%s33 + $0x8] sm:$0xff]
  %s36 = scalar_lea.vmem %s1, 16
  %v37 = vld [vmem:[%s36] sm:$0xff]
  %39 = vset.pattern.permute.xlu0 0
  %40 = vperm.xlu0 %39, %v37
  %v41 = vpop.permute.xlu0 %40
  %v43 = vmul.f32 %v34, %v41
  %v44 = vmul.f32 %v35, %v41
  %s45 = scalar_lea.vmem %s0, 48
  %v46 = vld [vmem:[%s45] sm:$0xff]
  %v47 = vld [vmem:[%s45 + $0x8] sm:$0xff]
  %s48 = scalar_lea.vmem %s1, 24
  %v49 = vld [vmem:[%s48] sm:$0xff]
  %51 = vset.pattern.permute.xlu0 0
  %52 = vperm.xlu0 %51, %v49
  %v53 = vpop.permute.xlu0 %52
  %v55 = vmul.f32 %v46, %v53
  %v56 = vmul.f32 %v47, %v53
  %s57 = scalar_lea.vmem %s0, 64
  %v58 = vld [vmem:[%s57] sm:$0xff]
  %v59 = vld [vmem:[%s57 + $0x8] sm:$0xff]
  %s60 = scalar_lea.vmem %s1, 32
  %v61 = vld [vmem:[%s60] sm:$0xff]
  %63 = vset.pattern.permute.xlu0 0
  %64 = vperm.xlu0 %63, %v61
  %v65 = vpop.permute.xlu0 %64
  %v67 = vmul.f32 %v58, %v65
  %v68 = vmul.f32 %v59, %v65
  %s69 = scalar_lea.vmem %s0, 80
  %v70 = vld [vmem:[%s69] sm:$0xff]
  %v71 = vld [vmem:[%s69 + $0x8] sm:$0xff]
  %s72 = scalar_lea.vmem %s1, 40
  %v73 = vld [vmem:[%s72] sm:$0xff]
  %75 = vset.pattern.permute.xlu0 0
  %76 = vperm.xlu0 %75, %v73
  %v77 = vpop.permute.xlu0 %76
  %v79 = vmul.f32 %v70, %v77
  %v80 = vmul.f32 %v71, %v77
  %s81 = scalar_lea.vmem %s0, 96
  %v82 = vld [vmem:[%s81] sm:$0xff]
  %v83 = vld [vmem:[%s81 + $0x8] sm:$0xff]
  %s84 = scalar_lea.vmem %s1, 48
  %v85 = vld [vmem:[%s84] sm:$0xff]
  %87 = vset.pattern.permute.xlu0 0
  %88 = vperm.xlu0 %87, %v85
  %v89 = vpop.permute.xlu0 %88
  %v91 = vmul.f32 %v82, %v89
  %v92 = vmul.f32 %v83, %v89
  %s93 = scalar_lea.vmem %s0, 112
  %v94 = vld [vmem:[%s93] sm:$0xff]
  %v95 = vld [vmem:[%s93 + $0x8] sm:$0xff]
  %s96 = scalar_lea.vmem %s1, 56
  %v97 = vld [vmem:[%s96] sm:$0xff]
  %99 = vset.pattern.permute.xlu0 0
  %100 = vperm.xlu0 %99, %v97
  %v101 = vpop.permute.xlu0 %100
  %v103 = vmul.f32 %v94, %v101
  %v104 = vmul.f32 %v95, %v101
  %s105 = scalar_lea.vmem %s0, 128
  %v106 = vld [vmem:[%s105] sm:$0xff]
  %v107 = vld [vmem:[%s105 + $0x8] sm:$0xff]
  %s108 = scalar_lea.vmem %s1, 64
  %v109 = vld [vmem:[%s108] sm:$0xff]
  %111 = vset.pattern.permute.xlu0 0
  %112 = vperm.xlu0 %111, %v109
  %v113 = vpop.permute.xlu0 %112
  %v115 = vmul.f32 %v106, %v113
  %v116 = vmul.f32 %v107, %v113
  %v117 = vadd.f32 %v19, %v31
  %v118 = vadd.f32 %v20, %v32
  %v119 = vadd.f32 %v43, %v55
  %v120 = vadd.f32 %v44, %v56
  %v121 = vadd.f32 %v67, %v79
  %v122 = vadd.f32 %v68, %v80
  %v123 = vadd.f32 %v91, %v103
  %v124 = vadd.f32 %v92, %v104
  %v125 = vadd.f32 %v117, %v119
  %v126 = vadd.f32 %v118, %v120
  %v127 = vadd.f32 %v121, %v123
  %v128 = vadd.f32 %v122, %v124
  %v129 = vadd.f32 %v125, %v127
  %v130 = vadd.f32 %v126, %v128
  %v131 = vadd.f32 %v129, %v115
  %v132 = vadd.f32 %v130, %v116
  %133 = vst [vmem:[%s2] sm:$0xff] %v131
  %134 = vst [vmem:[%s2 + $0x8] sm:$0xff] %v132
  // Predicated region
  $region10: #{agl_forward.3} parent=0 // pred_check
    _
  $region11: #{agl_forward.3} parent=0 // pred_check_branch
    %136 = sbr.rel (0) target = $region13
  $region12: #{agl_forward.3} parent=0 // pred_region
    _
  $region13: #{agl_forward.3} parent=0 // pred_fallthru
    _
  // Predicated region
  $region14: #{agl_forward.3} parent=0 // pred_check
    _
  $region15: #{agl_forward.3} parent=0 // pred_check_branch
    %138 = sbr.rel (0) target = $region17
  $region16: #{agl_forward.3} parent=0 // pred_region
    _
  $region17: #{agl_forward.3} parent=0 // pred_fallthru
    _

</llo_original>
